<compile_context>
chip_gen: v5e
topology: v5e:2x2
jax: 0.10.0
libtpu: 0.0.40
codegen_flags: <defaults>
</compile_context>

<pallas_src>
import jax
import jax.numpy as jnp
from jax.experimental import pallas as pl
from jax.experimental.pallas import tpu as pltpu


# ----------------------------------------------------------------------------- kernel
def lstm_cell_kernel(uh_ref, c_ref, w_ref, b_ref, h_out_ref, c_out_ref):
    """One grid step owns all four gates for its (batch-tile, hidden-tile)."""
    th = h_out_ref.shape[-1]

    uh = uh_ref[...]                                       # [tb, K]
    # Single wide MXU contraction over K for all 4 gates, f32 accumulation.
    z = jnp.dot(uh, w_ref[...], preferred_element_type=jnp.float32)   # [tb, 4*th]
    z = z + b_ref[...].astype(jnp.float32)                 # [1, 4*th] broadcast

    # Static, 128-aligned lane slices (th is a multiple of 128 when tiled).
    i = jax.nn.sigmoid(z[:, 0 * th:1 * th])
    f = jax.nn.sigmoid(z[:, 1 * th:2 * th])
    g = jnp.tanh(z[:, 2 * th:3 * th])
    o = jax.nn.sigmoid(z[:, 3 * th:4 * th])

    c_prev = c_ref[...].astype(jnp.float32)
    c_next = f * c_prev + i * g
    h_next = o * jnp.tanh(c_next)

    h_out_ref[...] = h_next.astype(h_out_ref.dtype)
    c_out_ref[...] = c_next.astype(c_out_ref.dtype)


# ----------------------------------------------------------------------------- tiling helpers
def _round_up(x, m):
    return ((x + m - 1) // m) * m


def _vmem_capacity_bytes():
    """Physical VMEM of the current generation (fallback: conservative v7x)."""
    try:
        return int(pltpu.get_tpu_info().vmem_capacity_bytes)
    except Exception:
        return 64 * 1024 * 1024


def _select_batch_tile(B0, act_dtype):
    """Batch tile: full batch when small, else 128-row tiles (bounds vregs)."""
    sub = 8 if jnp.dtype(act_dtype).itemsize >= 4 else 16   # bf16 packs 16 sublanes
    Bp = _round_up(B0, sub)
    if Bp > 128:
        tb = 128
        Bp = _round_up(B0, tb)
    else:
        tb = Bp
    return Bp, tb


def _select_hidden_tile(Hp, K, tb, w_bytes, vmem_cap):
    """Largest 128-multiple divisor of Hp such that:
       * the double-buffered fused weight block (2 * K * 4*th * w_bytes) fits
         a per-generation VMEM budget,
       * there are >= 2 hidden tiles when Hp >= 256 (megacore sharding),
       * vreg pressure stays bounded when the batch tile is large."""
    w_budget = int(vmem_cap * 0.55)
    max_th = 512 if tb <= 32 else 256
    if Hp >= 256:
        max_th = min(max_th, Hp // 2)
    th = 128                                   # minimum legal lane-dense tile
    cand = 128
    while cand <= max_th:
        if Hp % cand == 0 and 2 * 4 * K * cand * w_bytes <= w_budget:
            th = cand
        cand += 128
    return th


# ----------------------------------------------------------------------------- wrapper
def lstm_cell(u, h, c, w, b):
    """Fused LSTM cell (single time step).

    u: [B, I], h: [B, H], c: [B, H]
    w: [4, I+H, H]  gate order (i, f, g, o); w[g] = [W_g.weight.T ; U_g.weight.T]
    b: [4, H]       b[g] = W_g.bias + b_g
    Returns (h_next [B, H], c_next [B, H]) with dtypes of h / c respectively.
    """
    B0, H = h.shape
    K = u.shape[1] + H

    # Fuse the x- and h- matmuls into one contraction over K = I + H.
    uh = jnp.concatenate([u, h], axis=1)
    act_dtype = uh.dtype
    w_bytes = jnp.dtype(w.dtype).itemsize

    vmem_cap = _vmem_capacity_bytes()
    Bp, tb = _select_batch_tile(B0, act_dtype)
    Hp = _round_up(H, 128)                      # always tileable hidden axis
    th = _select_hidden_tile(Hp, K, tb, w_bytes, vmem_cap)
    n_ht = Hp // th
    n_bt = Bp // tb

    # Pad activations (zero pads are benign: sliced off below, no NaN risk).
    if Bp != B0:
        uh = jnp.pad(uh, ((0, Bp - B0), (0, 0)))
    c_p = c
    if Bp != B0 or Hp != H:
        c_p = jnp.pad(c, ((0, Bp - B0), (0, Hp - H)))

    # Tile-major, gate-along-lanes weight layout:
    #   w_fused[j, :, g*th:(g+1)*th] == w[g, :, j*th:(j+1)*th]
    # so each grid step's weight block is ONE contiguous [K, 4*th] HBM slab.
    w_p = w if Hp == H else jnp.pad(w, ((0, 0), (0, 0), (0, Hp - H)))
    w_fused = (w_p.reshape(4, K, n_ht, th)
                   .transpose(2, 1, 0, 3)
                   .reshape(n_ht, K, 4 * th))
    b_p = b if Hp == H else jnp.pad(b, ((0, 0), (0, Hp - H)))
    b_fused = (b_p.reshape(4, n_ht, th)
                   .transpose(1, 0, 2)
                   .reshape(n_ht, 1, 4 * th))

    vmem_limit = min(int(vmem_cap * 0.85), 112 * 1024 * 1024)

    grid_spec = pltpu.PrefetchScalarGridSpec(
        num_scalar_prefetch=0,
        # Hidden tile outermost, batch tile innermost: the weight block index
        # is constant along the inner axis, so each weight tile is DMA'd once
        # and reused across all batch tiles.
        grid=(n_ht, n_bt),
        in_specs=[
            pl.BlockSpec((tb, K), lambda j, i: (i, 0)),              # uh
            pl.BlockSpec((tb, th), lambda j, i: (i, j)),             # c slice
            pl.BlockSpec((None, K, 4 * th), lambda j, i: (j, 0, 0)), # fused weights
            pl.BlockSpec((None, 1, 4 * th), lambda j, i: (j, 0, 0)), # fused bias
        ],
        out_specs=(
            pl.BlockSpec((tb, th), lambda j, i: (i, j)),             # h_next
            pl.BlockSpec((tb, th), lambda j, i: (i, j)),             # c_next
        ),
    )

    h_next, c_next = pl.pallas_call(
        lstm_cell_kernel,
        out_shape=(jax.ShapeDtypeStruct((Bp, Hp), h.dtype),
                   jax.ShapeDtypeStruct((Bp, Hp), c.dtype)),
        grid_spec=grid_spec,
        compiler_params=pltpu.CompilerParams(
            dimension_semantics=("parallel", "parallel"),  # megacore sharding
            vmem_limit_bytes=vmem_limit,
        ),
    )(uh, c_p, w_fused, b_fused)

    if Bp != B0 or Hp != H:
        h_next = h_next[:B0, :H]
        c_next = c_next[:B0, :H]
    return h_next, c_next


# ----------------------------------------------------------------------------- reference & params
def lstm_cell_ref(u, h, c, w, b):
    """Pure-JAX f32 reference mirroring the PyTorch forward."""
    uh = jnp.concatenate([u, h], axis=1).astype(jnp.float32)
    wf = w.astype(jnp.float32)
    bf = b.astype(jnp.float32)
    cf = c.astype(jnp.float32)
    i = jax.nn.sigmoid(uh @ wf[0] + bf[0])
    f = jax.nn.sigmoid(uh @ wf[1] + bf[1])
    g = jnp.tanh(uh @ wf[2] + bf[2])
    o = jax.nn.sigmoid(uh @ wf[3] + bf[3])
    c_next = f * cf + i * g
    h_next = o * jnp.tanh(c_next)
    return h_next, c_next


def make_params(key, input_size, hidden_size, dtype=jnp.float32):
    """Synthetic parameters matching the PyTorch module, pre-fused per gate.

    PyTorch holds W_g.weight [H, I], U_g.weight [H, H], W_g.bias [H], b_g [H].
    Fused layout: w[g] = [W_g.weight.T ; U_g.weight.T]  -> [I+H, H]
                  b[g] = W_g.bias + b_g                 -> [H]
    Gate order: i, f, g, o.
    """
    ks = jax.random.split(key, 12)
    scale = 0.1
    w_gates, b_gates = [], []
    for gate in range(4):
        wx = scale * jax.random.normal(ks[gate], (input_size, hidden_size), jnp.float32)
        wh = scale * jax.random.normal(ks[4 + gate], (hidden_size, hidden_size), jnp.float32)
        lin_b = scale * jax.random.normal(ks[8 + gate], (hidden_size,), jnp.float32)
        extra_b = jnp.zeros((hidden_size,), jnp.float32)   # b_i..b_o init to zero
        w_gates.append(jnp.concatenate([wx, wh], axis=0))   # [I+H, H]
        b_gates.append(lin_b + extra_b)                      # [H]
    w = jnp.stack(w_gates, axis=0).astype(dtype)             # [4, I+H, H]
    b = jnp.stack(b_gates, axis=0).astype(dtype)             # [4, H]
    return w, b


# ----------------------------------------------------------------------------- self-test
if __name__ == "__main__":
    key = jax.random.PRNGKey(0)

    # --- check 1: small shapes (like the module's demo), f32, grid (1,1) ----
    batch, input_size, hidden_size = 8, 4, 32
    k_u, k_h, k_c, k_p, k2 = jax.random.split(key, 5)
    u = jax.random.normal(k_u, (batch, input_size), jnp.float32)
    h = jax.random.normal(k_h, (batch, hidden_size), jnp.float32)
    c = jax.random.normal(k_c, (batch, hidden_size), jnp.float32)
    w, b = make_params(k_p, input_size, hidden_size)

    h_next, c_next = jax.block_until_ready(lstm_cell(u, h, c, w, b))
    h_ref, c_ref = lstm_cell_ref(u, h, c, w, b)
    assert jnp.allclose(h_next, h_ref, atol=2e-5, rtol=2e-5)
    assert jnp.allclose(c_next, c_ref, atol=2e-5, rtol=2e-5)

    # --- check 2: larger hidden + batch -> 2x2 grid (batch AND hidden tiles) -
    b2_batch, b2_in, b2_hid = 144, 16, 256
    k_u2, k_h2, k_c2, k_p2 = jax.random.split(k2, 4)
    u2 = jax.random.normal(k_u2, (b2_batch, b2_in), jnp.float32)
    h2 = jax.random.normal(k_h2, (b2_batch, b2_hid), jnp.float32)
    c2 = jax.random.normal(k_c2, (b2_batch, b2_hid), jnp.float32)
    w2, b2 = make_params(k_p2, b2_in, b2_hid)

    h2_next, c2_next = jax.block_until_ready(lstm_cell(u2, h2, c2, w2, b2))
    h2_ref, c2_ref = lstm_cell_ref(u2, h2, c2, w2, b2)
    assert jnp.allclose(h2_next, h2_ref, atol=1e-4, rtol=1e-4)
    assert jnp.allclose(c2_next, c2_ref, atol=1e-4, rtol=1e-4)

    # --- check 3: bf16 weights/activations (f32 MXU accumulation kept) ------
    b3_batch = 24        # exercises bf16 batch padding to a multiple of 16
    u3 = u2[:b3_batch].astype(jnp.bfloat16)
    h3 = h2[:b3_batch].astype(jnp.bfloat16)
    c3 = c2[:b3_batch]
    h3_next, c3_next = jax.block_until_ready(
        lstm_cell(u3, h3, c3, w2.astype(jnp.bfloat16), b2.astype(jnp.bfloat16)))
    h3_ref, c3_ref = lstm_cell_ref(u3, h3, c3, w2, b2)
    assert jnp.allclose(h3_next.astype(jnp.float32), h3_ref, atol=4e-2, rtol=4e-2)
    assert jnp.allclose(c3_next.astype(jnp.float32), c3_ref, atol=4e-2, rtol=4e-2)

    print("KERNEL_OK")
</pallas_src>

<mosaic_0001>
module attributes {stable_mosaic.version = 11 : i64} {
  func.func @lstm_cell_kernel(%arg0: i32, %arg1: i32, %arg2: memref<8x36xf32, #tpu.memory_space<vmem>>, %arg3: memref<8x128xf32, #tpu.memory_space<vmem>>, %arg4: memref<1x36x512xf32, #tpu.memory_space<vmem>>, %arg5: memref<1x1x512xf32, #tpu.memory_space<vmem>>, %arg6: memref<8x128xf32, #tpu.memory_space<vmem>>, %arg7: memref<8x128xf32, #tpu.memory_space<vmem>>) attributes {dimension_semantics = [#tpu.dimension_semantics<parallel>, #tpu.dimension_semantics<parallel>], iteration_bounds = array<i64: 1, 1>, scalar_prefetch = 0 : i64, scratch_operands = 0 : i64, tpu.core_type = #tpu.core_type<tc>, window_params = [{transform_indices = @transform_0, window_bounds = array<i64: 8, 36>}, {transform_indices = @transform_1, window_bounds = array<i64: 8, 128>}, {transform_indices = @transform_2, window_bounds = array<i64: 1, 36, 512>}, {transform_indices = @transform_3, window_bounds = array<i64: 1, 1, 512>}, {transform_indices = @transform_4, window_bounds = array<i64: 8, 128>}, {transform_indices = @transform_5, window_bounds = array<i64: 8, 128>}]} {
    %c0 = arith.constant 0 : index
    %c0_0 = arith.constant 0 : index
    %0 = vector.load %arg2[%c0, %c0_0] : memref<8x36xf32, #tpu.memory_space<vmem>>, vector<8x36xf32>
    %c0_1 = arith.constant 0 : index
    %c0_2 = arith.constant 0 : index
    %c0_3 = arith.constant 0 : index
    %1 = vector.load %arg4[%c0_1, %c0_2, %c0_3] : memref<1x36x512xf32, #tpu.memory_space<vmem>>, vector<1x36x512xf32>
    %2 = vector.shape_cast %1 : vector<1x36x512xf32> to vector<36x512xf32>
    %cst = arith.constant dense<0.000000e+00> : vector<8x512xf32>
    %3 = tpu.matmul %0, %2, %cst {dimension_numbers = #tpu.dot_dimension_numbers<[1], [0], [0], [1], [0, 0, 1, 1], [], []>} : vector<8x36xf32>, vector<36x512xf32>, vector<8x512xf32> -> vector<8x512xf32>
    %c0_4 = arith.constant 0 : index
    %c0_5 = arith.constant 0 : index
    %c0_6 = arith.constant 0 : index
    %4 = vector.load %arg5[%c0_4, %c0_5, %c0_6] : memref<1x1x512xf32, #tpu.memory_space<vmem>>, vector<1x1x512xf32>
    %5 = vector.shape_cast %4 : vector<1x1x512xf32> to vector<1x512xf32>
    %6 = vector.broadcast %5 : vector<1x512xf32> to vector<8x512xf32>
    %7 = arith.addf %3, %6 : vector<8x512xf32>
    %8 = vector.extract_strided_slice %7 {offsets = [0, 0], sizes = [8, 128], strides = [1, 1]} : vector<8x512xf32> to vector<8x128xf32>
    %9 = arith.negf %8 : vector<8x128xf32>
    %10 = math.exp %9 : vector<8x128xf32>
    %cst_7 = arith.constant 1.000000e+00 : f32
    %11 = vector.broadcast %cst_7 : f32 to vector<8x128xf32>
    %12 = arith.addf %11, %10 : vector<8x128xf32>
    %13 = arith.divf %11, %12 : vector<8x128xf32>
    %14 = vector.extract_strided_slice %7 {offsets = [0, 128], sizes = [8, 128], strides = [1, 1]} : vector<8x512xf32> to vector<8x128xf32>
    %15 = arith.negf %14 : vector<8x128xf32>
    %16 = math.exp %15 : vector<8x128xf32>
    %cst_8 = arith.constant 1.000000e+00 : f32
    %17 = vector.broadcast %cst_8 : f32 to vector<8x128xf32>
    %18 = arith.addf %17, %16 : vector<8x128xf32>
    %19 = arith.divf %17, %18 : vector<8x128xf32>
    %20 = vector.extract_strided_slice %7 {offsets = [0, 256], sizes = [8, 128], strides = [1, 1]} : vector<8x512xf32> to vector<8x128xf32>
    %21 = math.tanh %20 : vector<8x128xf32>
    %22 = vector.extract_strided_slice %7 {offsets = [0, 384], sizes = [8, 128], strides = [1, 1]} : vector<8x512xf32> to vector<8x128xf32>
    %23 = arith.negf %22 : vector<8x128xf32>
    %24 = math.exp %23 : vector<8x128xf32>
    %cst_9 = arith.constant 1.000000e+00 : f32
    %25 = vector.broadcast %cst_9 : f32 to vector<8x128xf32>
    %26 = arith.addf %25, %24 : vector<8x128xf32>
    %27 = arith.divf %25, %26 : vector<8x128xf32>
    %c0_10 = arith.constant 0 : index
    %c0_11 = arith.constant 0 : index
    %28 = vector.load %arg3[%c0_10, %c0_11] : memref<8x128xf32, #tpu.memory_space<vmem>>, vector<8x128xf32>
    %29 = arith.mulf %19, %28 : vector<8x128xf32>
    %30 = arith.mulf %13, %21 : vector<8x128xf32>
    %31 = arith.addf %29, %30 : vector<8x128xf32>
    %32 = math.tanh %31 : vector<8x128xf32>
    %33 = arith.mulf %27, %32 : vector<8x128xf32>
    %c0_12 = arith.constant 0 : index
    %c0_13 = arith.constant 0 : index
    %34 = vector.load %arg6[%c0_12, %c0_13] : memref<8x128xf32, #tpu.memory_space<vmem>>, vector<8x128xf32>
    tpu.vector_store %arg6[%c0_12, %c0_13], %33 {strides = array<i32>} : memref<8x128xf32, #tpu.memory_space<vmem>>, vector<8x128xf32>,
    %c0_14 = arith.constant 0 : index
    %c0_15 = arith.constant 0 : index
    %35 = vector.load %arg7[%c0_14, %c0_15] : memref<8x128xf32, #tpu.memory_space<vmem>>, vector<8x128xf32>
    tpu.vector_store %arg7[%c0_14, %c0_15], %31 {strides = array<i32>} : memref<8x128xf32, #tpu.memory_space<vmem>>, vector<8x128xf32>,
    return
  }
  func.func @transform_0(%arg0: i32, %arg1: i32) -> (i32, i32) {
    %c0_i32 = arith.constant 0 : i32
    %c0_i32_0 = arith.constant 0 : i32
    return %arg1, %c0_i32 : i32, i32
  }
  func.func @transform_1(%arg0: i32, %arg1: i32) -> (i32, i32) {
    %c0_i32 = arith.constant 0 : i32
    return %arg1, %arg0 : i32, i32
  }
  func.func @transform_2(%arg0: i32, %arg1: i32) -> (i32, i32, i32) {
    %c0_i32 = arith.constant 0 : i32
    %c0_i32_0 = arith.constant 0 : i32
    %c0_i32_1 = arith.constant 0 : i32
    return %arg0, %c0_i32, %c0_i32_0 : i32, i32, i32
  }
  func.func @transform_3(%arg0: i32, %arg1: i32) -> (i32, i32, i32) {
    %c0_i32 = arith.constant 0 : i32
    %c0_i32_0 = arith.constant 0 : i32
    %c0_i32_1 = arith.constant 0 : i32
    return %arg0, %c0_i32, %c0_i32_0 : i32, i32, i32
  }
  func.func @transform_4(%arg0: i32, %arg1: i32) -> (i32, i32) {
    %c0_i32 = arith.constant 0 : i32
    return %arg1, %arg0 : i32, i32
  }
  func.func @transform_5(%arg0: i32, %arg1: i32) -> (i32, i32) {
    %c0_i32 = arith.constant 0 : i32
    return %arg1, %arg0 : i32, i32
  }
}

</mosaic_0001>

<llo_original>
// kernel: tpu_custom_call.1
$region0: #{tpu_custom_call.1}
  #allocation0 [shape = 'u32[]', space=smem, size = 0x4, offset = 0x4, fixed_abs, tag = 'smem constant byte address 0x4 - core index']
  #allocation1 [shape = 'u32[72,128]{1,0:T(1,128)}', space=vmem, size = 0x9000, scoped, tag = 'internal scratch']
  %s0 = inlined_call_operand.vmem [shape: f32[8,36], index: 0, kind: input, shape index: {}]
  %s1 = inlined_call_operand.vmem [shape: f32[8,128], index: 1, kind: input, shape index: {}]
  %s2 = inlined_call_operand.vmem [shape: f32[1,36,512], index: 2, kind: input, shape index: {}]
  %s3 = inlined_call_operand.vmem [shape: f32[1,1,512], index: 3, kind: input, shape index: {}]
  %s4 = inlined_call_operand.hbm [shape: f32[8,128], index: 4, kind: output, shape index: {0}]
  %s5 = inlined_call_operand.hbm [shape: f32[8,128], index: 5, kind: output, shape index: {1}]
  %6 = xla_tuple %s4, %s5
  %s7 = sld [smem:[#allocation0]]
  $region34: #{tpu_custom_call.1} parent=0
    _
  %s9 = ssub.s32 1, %s7
  %s10 = scalar_select 0, %s9, %s7
  $region1: #{tpu_custom_call.1} parent=0
    #allocation2 [shape = 'u8[4096]{0}', space=vmem, size = 0x1000, scoped, tag = 'output window, operand 0, single buffered']
    #allocation3 [shape = 's32[1]{0}', space=sflag, size = 0x4, scoped, tag = 'scoped memory for tpu_custom_call.1']
    #allocation4 [shape = 'u8[4096]{0}', space=vmem, size = 0x1000, scoped, tag = 'output window, operand 1, single buffered']
    #allocation5 [shape = 's32[1]{0}', space=sflag, size = 0x4, scoped, tag = 'scoped memory for tpu_custom_call.1']
    %11 = vsyncpa [#allocation3], 0
    %12 = vsyncpa [#allocation5], 0
    // Predicated region
    $region2: #{tpu_custom_call.1} parent=1 // pred_check
      _
    $region3: #{tpu_custom_call.1} parent=1 // pred_check_branch
      %14 = sbr.rel (0) target = $region5
    $region4: #{tpu_custom_call.1} parent=1 // pred_region
      _
    $region5: #{tpu_custom_call.1} parent=1 // pred_fallthru
      _
    // Predicated region
    $region6: #{tpu_custom_call.1} parent=1 // pred_check
      _
    $region7: #{tpu_custom_call.1} parent=1 // pred_check_branch
      %16 = sbr.rel (0) target = $region9
    $region8: #{tpu_custom_call.1} parent=1 // pred_region
      _
    $region9: #{tpu_custom_call.1} parent=1 // pred_fallthru
      _
    // Predicated region
    $region10: #{tpu_custom_call.1} parent=1 // pred_check
      _
    $region11: #{tpu_custom_call.1} parent=1 // pred_check_branch
      %18 = sbr.rel (0) target = $region13
    $region12: #{tpu_custom_call.1} parent=1 // pred_region
      _
    $region13: #{tpu_custom_call.1} parent=1 // pred_fallthru
      _
    // Predicated region
    $region14: #{tpu_custom_call.1} parent=1 // pred_check
      _
    $region15: #{tpu_custom_call.1} parent=1 // pred_check_branch
      %20 = sbr.rel (0) target = $region17
    $region16: #{tpu_custom_call.1} parent=1 // pred_region
      _
    $region17: #{tpu_custom_call.1} parent=1 // pred_fallthru
      _
    %v21 = vld [vmem:[%s0] sm:$0xff]
    %v22 = vld [vmem:[%s2] sm:$0xff]
    %v23 = vld [vmem:[%s2 + $0x8] sm:$0xff]
    %v24 = vld [vmem:[%s2 + $0x10] sm:$0xff]
    %v25 = vld [vmem:[%s2 + $0x18] sm:$0xff]
    %v26 = vld [vmem:[%s2 + $0x20] sm:$0xff]
    %v27 = vld [vmem:[%s2 + $0x28] sm:$0xff]
    %v28 = vld [vmem:[%s2 + $0x30] sm:$0xff]
    %v29 = vld [vmem:[%s2 + $0x38] sm:$0xff]
    %v30 = vld [vmem:[%s2 + $0x40] sm:$0xff]
    %v31 = vld [vmem:[%s2 + $0x48] sm:$0xff]
    %v32 = vld [vmem:[%s2 + $0x50] sm:$0xff]
    %v33 = vld [vmem:[%s2 + $0x58] sm:$0xff]
    %v34 = vld [vmem:[%s2 + $0x60] sm:$0xff]
    %v35 = vld [vmem:[%s2 + $0x68] sm:$0xff]
    %v36 = vld [vmem:[%s2 + $0x70] sm:$0xff]
    %v37 = vld [vmem:[%s2 + $0x78] sm:$0xff]
    %v38 = vld [vmem:[%s2 + $0x80] sm:$0xf]
    %v39 = vld [vmem:[%s2 + $0x88] sm:$0xf]
    %v40 = vld [vmem:[%s2 + $0x90] sm:$0xf]
    %v41 = vld [vmem:[%s2 + $0x98] sm:$0xf]
    %v42 = vld [vmem:[%s3] sm:$0xf]
    %v44 = vperm.slane %v42, 0
    %v45 = vperm.slane %v42, 1
    %v46 = vperm.slane %v42, 2
    %v47 = vperm.slane %v42, 3
    %vm52 = vcmask 293888
    %v54 = vsel %vm52, %v21, 0
    %vm56 = vcmask 1043456
    %v58 = vsel %vm56, %v38, 0
    %v61 = vsel %vm56, %v39, 0
    %v64 = vsel %vm56, %v40, 0
    %v67 = vsel %vm56, %v41, 0
    %69 = vmatpush.msra.mxu0 0.0
    %70 = vmatpush.msra.mxu0 0.0
    %71 = vmatpush.msra.mxu0 0.0
    %72 = vmatpush.msra.mxu0 0.0
    %73 = vmatpush.msra.mxu0 0.0
    %74 = vmatpush.msra.mxu0 0.0
    %75 = vmatpush.msra.mxu0 0.0
    %76 = vmatpush.msra.mxu0 0.0
    %77 = vmatpush.msra.mxu0 0.0
    %78 = vmatpush.msra.mxu0 0.0
    %79 = vmatpush.msra.mxu0 0.0
    %80 = vmatpush.msra.mxu0 %v58
    %81 = vmatpush.msra.mxu0 %v34
    %82 = vmatpush.msra.mxu0 %v30
    %83 = vmatpush.msra.mxu0 %v26
    %84 = vmatpush.msra.mxu0 %v22
    %85 = vmatmul.f32.gmra.mxu0 %v54
    %v86 = vpop.f32.mrf.mxu0
    %v87 = vadd.f32 %v44, %v86
    %88 = vdwg.mxu0
    %89 = vmatpush.msra.mxu0 0.0
    %90 = vmatpush.msra.mxu0 0.0
    %91 = vmatpush.msra.mxu0 0.0
    %92 = vmatpush.msra.mxu0 0.0
    %93 = vmatpush.msra.mxu0 0.0
    %94 = vmatpush.msra.mxu0 0.0
    %95 = vmatpush.msra.mxu0 0.0
    %96 = vmatpush.msra.mxu0 0.0
    %97 = vmatpush.msra.mxu0 0.0
    %98 = vmatpush.msra.mxu0 0.0
    %99 = vmatpush.msra.mxu0 0.0
    %100 = vmatpush.msra.mxu0 %v61
    %101 = vmatpush.msra.mxu0 %v35
    %102 = vmatpush.msra.mxu0 %v31
    %103 = vmatpush.msra.mxu0 %v27
    %104 = vmatpush.msra.mxu0 %v23
    %105 = vmatmul.f32.gmra.mxu0 %v54
    %v106 = vpop.f32.mrf.mxu0
    %v107 = vadd.f32 %v45, %v106
    %108 = vdwg.mxu0
    %109 = vmatpush.msra.mxu0 0.0
    %110 = vmatpush.msra.mxu0 0.0
    %111 = vmatpush.msra.mxu0 0.0
    %112 = vmatpush.msra.mxu0 0.0
    %113 = vmatpush.msra.mxu0 0.0
    %114 = vmatpush.msra.mxu0 0.0
    %115 = vmatpush.msra.mxu0 0.0
    %116 = vmatpush.msra.mxu0 0.0
    %117 = vmatpush.msra.mxu0 0.0
    %118 = vmatpush.msra.mxu0 0.0
    %119 = vmatpush.msra.mxu0 0.0
    %120 = vmatpush.msra.mxu0 %v64
    %121 = vmatpush.msra.mxu0 %v36
    %122 = vmatpush.msra.mxu0 %v32
    %123 = vmatpush.msra.mxu0 %v28
    %124 = vmatpush.msra.mxu0 %v24
    %125 = vmatmul.f32.gmra.mxu0 %v54
    %v126 = vpop.f32.mrf.mxu0
    %v127 = vadd.f32 %v46, %v126
    %128 = vdwg.mxu0
    %129 = vmatpush.msra.mxu0 0.0
    %130 = vmatpush.msra.mxu0 0.0
    %131 = vmatpush.msra.mxu0 0.0
    %132 = vmatpush.msra.mxu0 0.0
    %133 = vmatpush.msra.mxu0 0.0
    %134 = vmatpush.msra.mxu0 0.0
    %135 = vmatpush.msra.mxu0 0.0
    %136 = vmatpush.msra.mxu0 0.0
    %137 = vmatpush.msra.mxu0 0.0
    %138 = vmatpush.msra.mxu0 0.0
    %139 = vmatpush.msra.mxu0 0.0
    %140 = vmatpush.msra.mxu0 %v67
    %141 = vmatpush.msra.mxu0 %v37
    %142 = vmatpush.msra.mxu0 %v33
    %143 = vmatpush.msra.mxu0 %v29
    %144 = vmatpush.msra.mxu0 %v25
    %145 = vmatmul.f32.gmra.mxu0 %v54
    %v146 = vpop.f32.mrf.mxu0
    %v147 = vadd.f32 %v47, %v146
    %148 = vdwg.mxu0
    %v149 = vxor.u32 %v87, 2147483648
    %v150 = vmul.f32 %v149, 1.442695
    %v151 = vpow.pop %v150
    %v152 = vadd.f32 %v151, 1.0
    %v153 = vrcp.pop %v152
    %v154 = vmul.f32 %v152, %v153
    %v155 = vsub.f32 1.0, %v154
    %v156 = vmul.f32 %v153, %v155
    %v157 = vadd.f32 %v153, %v156
    %vm158 = vweird.f32 %v152
    %vm159 = vweird.f32 %v153
    %vm160 = vmor %vm158, %vm159
    %v161 = vsel %vm160, %v153, %v157
    %v162 = vand.u32 2147483647, %v152
    %vm163 = vcmp.eq.f32.partialorder %v162, 8.507059e+37
    %v164 = vand.u32 %v152, 2147483648
    %v165 = vor.u32 1.1754944e-38, %v164
    %v166 = vsel %vm163, %v165, %v161
    %v167 = vmul.f32 1.0, %v166
    %v168 = vxor.u32 %v107, 2147483648
    %v169 = vmul.f32 %v168, 1.442695
    %v170 = vpow.pop %v169
    %v171 = vadd.f32 %v170, 1.0
    %v172 = vrcp.pop %v171
    %v173 = vmul.f32 %v171, %v172
    %v174 = vsub.f32 1.0, %v173
    %v175 = vmul.f32 %v172, %v174
    %v176 = vadd.f32 %v172, %v175
    %vm177 = vweird.f32 %v171
    %vm178 = vweird.f32 %v172
    %vm179 = vmor %vm177, %vm178
    %v180 = vsel %vm179, %v172, %v176
    %v181 = vand.u32 2147483647, %v171
    %vm182 = vcmp.eq.f32.partialorder %v181, 8.507059e+37
    %v183 = vand.u32 %v171, 2147483648
    %v184 = vor.u32 1.1754944e-38, %v183
    %v185 = vsel %vm182, %v184, %v180
    %v186 = vmul.f32 1.0, %v185
    %v187 = vtanh.pop %v127
    %v188 = vxor.u32 %v147, 2147483648
    %v189 = vmul.f32 %v188, 1.442695
    %v190 = vpow.pop %v189
    %v191 = vadd.f32 %v190, 1.0
    %v192 = vrcp.pop %v191
    %v193 = vmul.f32 %v191, %v192
    %v194 = vsub.f32 1.0, %v193
    %v195 = vmul.f32 %v192, %v194
    %v196 = vadd.f32 %v192, %v195
    %vm197 = vweird.f32 %v191
    %vm198 = vweird.f32 %v192
    %vm199 = vmor %vm197, %vm198
    %v200 = vsel %vm199, %v192, %v196
    %v201 = vand.u32 2147483647, %v191
    %vm202 = vcmp.eq.f32.partialorder %v201, 8.507059e+37
    %v203 = vand.u32 %v191, 2147483648
    %v204 = vor.u32 1.1754944e-38, %v203
    %v205 = vsel %vm202, %v204, %v200
    %v206 = vmul.f32 1.0, %v205
    %v207 = vld [vmem:[%s1] sm:$0xff]
    %v208 = vmul.f32 %v186, %v207
    %v209 = vmul.f32 %v167, %v187
    %v210 = vadd.f32 %v208, %v209
    %v211 = vtanh.pop %v210
    %v212 = vmul.f32 %v206, %v211
    %213 = vst [vmem:[#allocation2] sm:$0xff] %v212
    %214 = vst [vmem:[#allocation4] sm:$0xff] %v210
    // Predicated region
    $region18: #{tpu_custom_call.1} parent=1 // pred_check
      _
    $region19: #{tpu_custom_call.1} parent=1 // pred_check_branch
      %216 = sbr.rel (0) target = $region21
    $region20: #{tpu_custom_call.1} parent=1 // pred_region
      %218 = vsyncadd [#allocation3], 0
      %s220 = sshll.u32 [#allocation2], 4
      %s221 = int_to_ptr.vmem [resolvable:$true] %s220
      %s222 = sshll.u32 %s4, 4
      %s223 = int_to_ptr.hbm [resolvable:$true] %s222
      %225 = dma.vmem_to_hbm [thread:$0]  %s221, 128, %s223, [#allocation3]
    $region21: #{tpu_custom_call.1} parent=1 // pred_fallthru
      _
    // Predicated region
    $region22: #{tpu_custom_call.1} parent=1 // pred_check
      _
    $region23: #{tpu_custom_call.1} parent=1 // pred_check_branch
      %227 = sbr.rel (0) target = $region25
    $region24: #{tpu_custom_call.1} parent=1 // pred_region
      %229 = vsyncadd [#allocation5], 0
      %s231 = sshll.u32 [#allocation4], 4
      %s232 = int_to_ptr.vmem [resolvable:$true] %s231
      %s233 = sshll.u32 %s5, 4
      %s234 = int_to_ptr.hbm [resolvable:$true] %s233
      %236 = dma.vmem_to_hbm [thread:$0]  %s232, 128, %s234, [#allocation5]
    $region25: #{tpu_custom_call.1} parent=1 // pred_fallthru
      _
    // Predicated region
    $region26: #{tpu_custom_call.1} parent=1 // pred_check
      _
    $region27: #{tpu_custom_call.1} parent=1 // pred_check_branch
      %238 = sbr.rel (0) target = $region29
    $region28: #{tpu_custom_call.1} parent=1 // pred_region
      %240 = dma.done [#allocation3], 128
    $region29: #{tpu_custom_call.1} parent=1 // pred_fallthru
      _
    // Predicated region
    $region30: #{tpu_custom_call.1} parent=1 // pred_check
      _
    $region31: #{tpu_custom_call.1} parent=1 // pred_check_branch
      %242 = sbr.rel (0) target = $region33
    $region32: #{tpu_custom_call.1} parent=1 // pred_region
      %244 = dma.done [#allocation5], 128
    $region33: #{tpu_custom_call.1} parent=1 // pred_fallthru
      _
    %245 = vsyncpa [#allocation3], 1
    %246 = vsyncpa [#allocation5], 1

</llo_original>
